<compile_context>
chip_gen: v5e
topology: v5e:2x2
jax: 0.10.0
libtpu: 0.0.40
codegen_flags: <defaults>
</compile_context>

<pallas_src>
import functools

import jax
import jax.numpy as jnp
from jax.experimental import pallas as pl
from jax.experimental.pallas import tpu as pltpu


def _round_up(x, m):
    return ((x + m - 1) // m) * m


def _fused_mlp_kernel(x_ref, *refs, n_layers, activation, discrim):
    """Entire MLP fused into one kernel body.

    x_ref : (TM, D0)                          VMEM (batch tile, unpadded D0)
    refs  : (w0, b0, w1, b1, ..., w_{L-1}, b_{L-1}, o_ref)
            w_l : (D_l_pad, D_{l+1}_pad)      VMEM, compute dtype (f32/bf16)
            b_l : (1, D_{l+1}_pad)            VMEM, f32
    o_ref : (TM, D_L)                         VMEM (output tile, unpadded D_L)
    Intermediates stay in vregs/VMEM; accumulation is always f32.
    """
    o_ref = refs[-1]
    params = refs[:-1]
    h = x_ref[...]
    for l in range(n_layers):
        w = params[2 * l][...]
        b = params[2 * l + 1][...]
        # First layer: h already in w.dtype (pre-cast in wrapper) -> no-op cast.
        y = jnp.dot(h.astype(w.dtype), w, preferred_element_type=jnp.float32)
        y = y + b.astype(jnp.float32)
        if l != n_layers - 1:
            if activation == "relu":
                y = jnp.maximum(y, 0.0)
            else:  # "sigmoid"
                y = jax.nn.sigmoid(y)
        elif discrim:
            y = jax.nn.sigmoid(y)
        h = y
    o_ref[...] = h.astype(o_ref.dtype)


def fused_mlp_forward(x, weights_padded, biases_padded, dims, dims_pad,
                      *, activation, discrim, tm=512, out_dtype=None):
    """y = MLP(x) with one fused, batch-tiled pallas_call."""
    n, d_in = x.shape
    assert d_in == dims[0] == dims_pad[0]
    d_out = dims[-1]
    assert dims_pad[-1] == d_out
    n_layers = len(weights_padded)
    if out_dtype is None:
        out_dtype = x.dtype

    # ---- Batch tile selection -------------------------------------------
    # Large default tile (amortizes ~0.35us/step overhead); multiple of 8.
    n8 = _round_up(n, 8)
    tm = min(tm, n8)
    tm = max(8, _round_up(tm, 8))
    # Guarantee >= 2 grid steps when the batch allows it, so the "parallel"
    # batch axis can shard across both TensorCores on v7x (neutral on
    # v5e/v6e which have a single TC).
    if n8 >= 16:
        tm = min(tm, _round_up((n8 + 1) // 2, 8))
    n_pad = _round_up(n, tm)

    # Pad the batch dim only (features are read at their true width).
    x_p = x if n_pad == n else jnp.pad(x, ((0, n_pad - n), (0, 0)))

    args = [x_p]
    for l in range(n_layers):
        args.append(weights_padded[l])
        args.append(biases_padded[l])

    # ---- VMEM budget ------------------------------------------------------
    x_bytes = 2 * tm * d_in * jnp.dtype(x_p.dtype).itemsize        # double-buffered
    o_bytes = 2 * tm * d_out * jnp.dtype(out_dtype).itemsize       # double-buffered
    w_bytes = sum(int(w.size) * jnp.dtype(w.dtype).itemsize for w in weights_padded)
    b_bytes = sum(int(b.size) * jnp.dtype(b.dtype).itemsize for b in biases_padded)
    resident = x_bytes + o_bytes + w_bytes + b_bytes                # weights single-buffered
    vmem_limit = int(min(64 << 20, max(32 << 20, 2 * resident + (4 << 20))))

    kernel = functools.partial(_fused_mlp_kernel, n_layers=n_layers,
                               activation=activation, discrim=discrim)

    def _build(weight_pipeline_mode):
        wkw = ({} if weight_pipeline_mode is None
               else {"pipeline_mode": weight_pipeline_mode})
        in_specs = [pl.BlockSpec((tm, d_in), lambda i: (i, 0))]
        for l in range(n_layers):
            # Constant index_map -> block fetched once, VMEM-resident.
            in_specs.append(pl.BlockSpec((dims_pad[l], dims_pad[l + 1]),
                                         lambda i: (0, 0), **wkw))
            in_specs.append(pl.BlockSpec((1, dims_pad[l + 1]),
                                         lambda i: (0, 0), **wkw))
        return pl.pallas_call(
            kernel,
            out_shape=jax.ShapeDtypeStruct((n_pad, d_out), out_dtype),
            grid_spec=pl.GridSpec(
                grid=(n_pad // tm,),
                in_specs=in_specs,
                out_specs=pl.BlockSpec((tm, d_out), lambda i: (i, 0)),
            ),
            compiler_params=pltpu.CompilerParams(
                dimension_semantics=("parallel",),  # batch tiles shard across TCs
                vmem_limit_bytes=vmem_limit,
            ),
        )

    try:
        # Single-buffer the resident weights/biases (they are fetched once;
        # default double-buffering would just double their VMEM footprint).
        out_pad = _build(pl.Buffered(1))(*args)
    except Exception:
        # Fallback for jax versions where pipeline_mode on a top-level
        # pallas_call BlockSpec is unsupported: default (double) buffering.
        out_pad = _build(None)(*args)

    return out_pad if n_pad == n else out_pad[:n]


class MLPPallas:
    """Mirror of the PyTorch MLP forward pass.

    dims = [input_dim, *hidden_size, output_dim]; Linear between consecutive
    dims; `activation` after every layer except the last; optional sigmoid on
    the last layer when discrim=True. dropout=-1 (default) => no dropout.
    """

    def __init__(self, input_dim, output_dim, hidden_size=(64, 48),
                 activation="relu", discrim=False, dropout=-1,
                 param_dtype=jnp.float32, key=None):
        dims = [input_dim] + list(hidden_size) + [output_dim]
        self.dims = dims
        # Pad ONLY hidden dims to 128 lanes (lane-dense intermediates that
        # never touch HBM).  Input / output dims stay at their true width so
        # the x read and the y write carry no padding traffic.
        self.dims_pad = ([dims[0]]
                         + [_round_up(d, 128) for d in dims[1:-1]]
                         + [dims[-1]])
        self.activation = activation
        self.discrim = discrim
        self.dropout = dropout
        # TODO(synk): training-mode dropout masks are not implemented
        # (dropout=-1 inference path only).
        self.param_dtype = param_dtype
        if key is None:
            key = jax.random.PRNGKey(0)

        # Unpadded f32 params (reference) + padded compute-dtype params (kernel).
        # INVARIANT: all padded rows/cols of weights_padded and padded entries
        # of biases_padded MUST stay zero.  Padded activation columns (even
        # after sigmoid, which maps the 0 pad to 0.5) are annihilated by the
        # zero rows of the next layer's weights, keeping results exact.
        self.weights = []          # (in, out) f32  == PyTorch W.T
        self.biases = []           # (out,)    f32
        self.weights_padded = []   # (in_pad, out_pad) param_dtype, zero-padded
        self.biases_padded = []    # (1, out_pad)      f32, zero-padded
        for i in range(len(dims) - 1):
            key, kw, kb = jax.random.split(key, 3)
            fan_in = dims[i]
            bound = 1.0 / jnp.sqrt(fan_in)
            w = jax.random.uniform(kw, (dims[i], dims[i + 1]),
                                   minval=-bound, maxval=bound,
                                   dtype=jnp.float32)
            b = jax.random.uniform(kb, (dims[i + 1],),
                                   minval=-bound, maxval=bound,
                                   dtype=jnp.float32)
            self.weights.append(w)
            self.biases.append(b)

            w_pad = jnp.zeros((self.dims_pad[i], self.dims_pad[i + 1]),
                              dtype=param_dtype)
            w_pad = w_pad.at[:dims[i], :dims[i + 1]].set(w.astype(param_dtype))
            b_pad = jnp.zeros((1, self.dims_pad[i + 1]), dtype=jnp.float32)
            b_pad = b_pad.at[0, :dims[i + 1]].set(b)
            self.weights_padded.append(w_pad)
            self.biases_padded.append(b_pad)

    def __call__(self, x, tm=512):
        out_dtype = x.dtype
        # bf16 path: pre-cast x so it streams through HBM at half the bytes
        # and feeds the MXU natively; accumulation stays f32 in-kernel.
        if x.dtype != self.param_dtype:
            x = x.astype(self.param_dtype)
        return fused_mlp_forward(
            x, self.weights_padded, self.biases_padded,
            self.dims, self.dims_pad,
            activation=self.activation, discrim=self.discrim,
            tm=tm, out_dtype=out_dtype)


def _reference_forward(mlp: MLPPallas, x):
    """Pure-JAX f32 reference using the unpadded parameters."""
    n_layers = len(mlp.weights)
    for i in range(n_layers):
        x = x @ mlp.weights[i] + mlp.biases[i]
        if i != n_layers - 1:
            if mlp.activation == "relu":
                x = jnp.maximum(x, 0.0)
            else:
                x = jax.nn.sigmoid(x)
        elif mlp.discrim:
            x = jax.nn.sigmoid(x)
    return x


if __name__ == "__main__":
    key = jax.random.PRNGKey(0)
    k_x, k_xb, k_p = jax.random.split(key, 3)

    batch = 8
    input_dim = 32
    hidden = (64, 48)
    output_dim = 16

    x = jax.random.normal(k_x, (batch, input_dim), dtype=jnp.float32)

    # f32 path (matches reference; slightly loosened vs 1e-5 since the MXU
    # f32 path uses reduced-precision passes at default precision).
    mlp = MLPPallas(input_dim, output_dim, hidden_size=hidden,
                    activation="relu", discrim=False, dropout=-1, key=k_p)
    out = jax.block_until_ready(mlp(x))
    ref = _reference_forward(mlp, x)
    assert out.shape == (batch, output_dim)
    assert jnp.allclose(out, ref, atol=2e-5, rtol=2e-5)

    # Larger batch: exercises batch padding, >=2 grid steps ("parallel"
    # sharding across TensorCores on v7x) and multi-tile pipelining.
    batch_big = 1000
    x_big = jax.random.normal(k_xb, (batch_big, input_dim), dtype=jnp.float32)
    out_big = jax.block_until_ready(mlp(x_big))
    ref_big = _reference_forward(mlp, x_big)
    assert out_big.shape == (batch_big, output_dim)
    assert jnp.allclose(out_big, ref_big, atol=2e-5, rtol=2e-5)

    # discrim=True path (sigmoid head).
    mlp_d = MLPPallas(input_dim, output_dim, hidden_size=hidden,
                      activation="relu", discrim=True, dropout=-1, key=k_p)
    out_d = jax.block_until_ready(mlp_d(x))
    ref_d = _reference_forward(mlp_d, x)
    assert jnp.allclose(out_d, ref_d, atol=2e-5, rtol=2e-5)

    # bf16 operands (weights AND pre-cast activations) with f32 accumulation —
    # loose tolerance against the f32 reference.
    mlp_bf16 = MLPPallas(input_dim, output_dim, hidden_size=hidden,
                         activation="relu", discrim=False, dropout=-1,
                         param_dtype=jnp.bfloat16, key=k_p)
    out_bf = jax.block_until_ready(mlp_bf16(x))
    ref_bf = _reference_forward(mlp_bf16, x)
    assert out_bf.shape == (batch, output_dim)
    assert out_bf.dtype == x.dtype  # output emitted in the caller's dtype
    assert jnp.allclose(out_bf, ref_bf, atol=0.15, rtol=0.15)

    print("KERNEL_OK")
</pallas_src>

<mosaic_0001>
module attributes {stable_mosaic.version = 11 : i64} {
  func.func @_fused_mlp_kernel(%arg0: i32, %arg1: memref<8x32xf32, #tpu.memory_space<vmem>>, %arg2: memref<32x128xf32, #tpu.memory_space<vmem>>, %arg3: memref<1x128xf32, #tpu.memory_space<vmem>>, %arg4: memref<128x128xf32, #tpu.memory_space<vmem>>, %arg5: memref<1x128xf32, #tpu.memory_space<vmem>>, %arg6: memref<128x16xf32, #tpu.memory_space<vmem>>, %arg7: memref<1x16xf32, #tpu.memory_space<vmem>>, %arg8: memref<8x16xf32, #tpu.memory_space<vmem>>) attributes {dimension_semantics = [#tpu.dimension_semantics<parallel>], iteration_bounds = array<i64: 1>, scalar_prefetch = 0 : i64, scratch_operands = 0 : i64, tpu.core_type = #tpu.core_type<tc>, window_params = [{transform_indices = @transform_0, window_bounds = array<i64: 8, 32>}, {pipeline_mode = #tpu.pipeline_mode<synchronous>, transform_indices = @transform_1, window_bounds = array<i64: 32, 128>}, {pipeline_mode = #tpu.pipeline_mode<synchronous>, transform_indices = @transform_2, window_bounds = array<i64: 1, 128>}, {pipeline_mode = #tpu.pipeline_mode<synchronous>, transform_indices = @transform_3, window_bounds = array<i64: 128, 128>}, {pipeline_mode = #tpu.pipeline_mode<synchronous>, transform_indices = @transform_4, window_bounds = array<i64: 1, 128>}, {pipeline_mode = #tpu.pipeline_mode<synchronous>, transform_indices = @transform_5, window_bounds = array<i64: 128, 16>}, {pipeline_mode = #tpu.pipeline_mode<synchronous>, transform_indices = @transform_6, window_bounds = array<i64: 1, 16>}, {transform_indices = @transform_7, window_bounds = array<i64: 8, 16>}]} {
    %c0 = arith.constant 0 : index
    %c0_0 = arith.constant 0 : index
    %0 = vector.load %arg1[%c0, %c0_0] : memref<8x32xf32, #tpu.memory_space<vmem>>, vector<8x32xf32>
    %c0_1 = arith.constant 0 : index
    %c0_2 = arith.constant 0 : index
    %1 = vector.load %arg2[%c0_1, %c0_2] : memref<32x128xf32, #tpu.memory_space<vmem>>, vector<32x128xf32>
    %c0_3 = arith.constant 0 : index
    %c0_4 = arith.constant 0 : index
    %2 = vector.load %arg3[%c0_3, %c0_4] : memref<1x128xf32, #tpu.memory_space<vmem>>, vector<1x128xf32>
    %cst = arith.constant dense<0.000000e+00> : vector<8x128xf32>
    %3 = tpu.matmul %0, %1, %cst {dimension_numbers = #tpu.dot_dimension_numbers<[1], [0], [0], [1], [0, 0, 1, 1], [], []>} : vector<8x32xf32>, vector<32x128xf32>, vector<8x128xf32> -> vector<8x128xf32>
    %4 = vector.broadcast %2 : vector<1x128xf32> to vector<8x128xf32>
    %5 = arith.addf %3, %4 : vector<8x128xf32>
    %cst_5 = arith.constant 0.000000e+00 : f32
    %6 = vector.broadcast %cst_5 : f32 to vector<8x128xf32>
    %7 = arith.maximumf %5, %6 : vector<8x128xf32>
    %c0_6 = arith.constant 0 : index
    %c0_7 = arith.constant 0 : index
    %8 = vector.load %arg4[%c0_6, %c0_7] : memref<128x128xf32, #tpu.memory_space<vmem>>, vector<128x128xf32>
    %c0_8 = arith.constant 0 : index
    %c0_9 = arith.constant 0 : index
    %9 = vector.load %arg5[%c0_8, %c0_9] : memref<1x128xf32, #tpu.memory_space<vmem>>, vector<1x128xf32>
    %cst_10 = arith.constant dense<0.000000e+00> : vector<8x128xf32>
    %10 = tpu.matmul %7, %8, %cst_10 {dimension_numbers = #tpu.dot_dimension_numbers<[1], [0], [0], [1], [0, 0, 1, 1], [], []>} : vector<8x128xf32>, vector<128x128xf32>, vector<8x128xf32> -> vector<8x128xf32>
    %11 = vector.broadcast %9 : vector<1x128xf32> to vector<8x128xf32>
    %12 = arith.addf %10, %11 : vector<8x128xf32>
    %cst_11 = arith.constant 0.000000e+00 : f32
    %13 = vector.broadcast %cst_11 : f32 to vector<8x128xf32>
    %14 = arith.maximumf %12, %13 : vector<8x128xf32>
    %c0_12 = arith.constant 0 : index
    %c0_13 = arith.constant 0 : index
    %15 = vector.load %arg6[%c0_12, %c0_13] : memref<128x16xf32, #tpu.memory_space<vmem>>, vector<128x16xf32>
    %c0_14 = arith.constant 0 : index
    %c0_15 = arith.constant 0 : index
    %16 = vector.load %arg7[%c0_14, %c0_15] : memref<1x16xf32, #tpu.memory_space<vmem>>, vector<1x16xf32>
    %cst_16 = arith.constant dense<0.000000e+00> : vector<8x16xf32>
    %17 = tpu.matmul %14, %15, %cst_16 {dimension_numbers = #tpu.dot_dimension_numbers<[1], [0], [0], [1], [0, 0, 1, 1], [], []>} : vector<8x128xf32>, vector<128x16xf32>, vector<8x16xf32> -> vector<8x16xf32>
    %18 = vector.broadcast %16 : vector<1x16xf32> to vector<8x16xf32>
    %19 = arith.addf %17, %18 : vector<8x16xf32>
    %c0_17 = arith.constant 0 : index
    %c0_18 = arith.constant 0 : index
    %20 = vector.load %arg8[%c0_17, %c0_18] : memref<8x16xf32, #tpu.memory_space<vmem>>, vector<8x16xf32>
    tpu.vector_store %arg8[%c0_17, %c0_18], %19 {strides = array<i32>} : memref<8x16xf32, #tpu.memory_space<vmem>>, vector<8x16xf32>,
    return
  }
  func.func @transform_0(%arg0: i32) -> (i32, i32) {
    %c0_i32 = arith.constant 0 : i32
    %c0_i32_0 = arith.constant 0 : i32
    return %arg0, %c0_i32 : i32, i32
  }
  func.func @transform_1(%arg0: i32) -> (i32, i32) {
    %c0_i32 = arith.constant 0 : i32
    %c0_i32_0 = arith.constant 0 : i32
    %c0_i32_1 = arith.constant 0 : i32
    return %c0_i32, %c0_i32_0 : i32, i32
  }
  func.func @transform_2(%arg0: i32) -> (i32, i32) {
    %c0_i32 = arith.constant 0 : i32
    %c0_i32_0 = arith.constant 0 : i32
    %c0_i32_1 = arith.constant 0 : i32
    return %c0_i32, %c0_i32_0 : i32, i32
  }
  func.func @transform_3(%arg0: i32) -> (i32, i32) {
    %c0_i32 = arith.constant 0 : i32
    %c0_i32_0 = arith.constant 0 : i32
    %c0_i32_1 = arith.constant 0 : i32
    return %c0_i32, %c0_i32_0 : i32, i32
  }
  func.func @transform_4(%arg0: i32) -> (i32, i32) {
    %c0_i32 = arith.constant 0 : i32
    %c0_i32_0 = arith.constant 0 : i32
    %c0_i32_1 = arith.constant 0 : i32
    return %c0_i32, %c0_i32_0 : i32, i32
  }
  func.func @transform_5(%arg0: i32) -> (i32, i32) {
    %c0_i32 = arith.constant 0 : i32
    %c0_i32_0 = arith.constant 0 : i32
    %c0_i32_1 = arith.constant 0 : i32
    return %c0_i32, %c0_i32_0 : i32, i32
  }
  func.func @transform_6(%arg0: i32) -> (i32, i32) {
    %c0_i32 = arith.constant 0 : i32
    %c0_i32_0 = arith.constant 0 : i32
    %c0_i32_1 = arith.constant 0 : i32
    return %c0_i32, %c0_i32_0 : i32, i32
  }
  func.func @transform_7(%arg0: i32) -> (i32, i32) {
    %c0_i32 = arith.constant 0 : i32
    %c0_i32_0 = arith.constant 0 : i32
    return %arg0, %c0_i32 : i32, i32
  }
}

module attributes {stable_mosaic.version = 11 : i64} {
  func.func @_fused_mlp_kernel(%arg0: i32, %arg1: memref<8x32xf32, #tpu.memory_space<vmem>>, %arg2: memref<32x128xf32, #tpu.memory_space<vmem>>, %arg3: memref<1x128xf32, #tpu.memory_space<vmem>>, %arg4: memref<128x128xf32, #tpu.memory_space<vmem>>, %arg5: memref<1x128xf32, #tpu.memory_space<vmem>>, %arg6: memref<128x16xf32, #tpu.memory_space<vmem>>, %arg7: memref<1x16xf32, #tpu.memory_space<vmem>>, %arg8: memref<8x16xf32, #tpu.memory_space<vmem>>) attributes {dimension_semantics = [#tpu.dimension_semantics<parallel>], iteration_bounds = array<i64: 1>, scalar_prefetch = 0 : i64, scratch_operands = 0 : i64, tpu.core_type = #tpu.core_type<tc>, window_params = [{transform_indices = @transform_0, window_bounds = array<i64: 8, 32>}, {pipeline_mode = #tpu.pipeline_mode<synchronous>, transform_indices = @transform_1, window_bounds = array<i64: 32, 128>}, {pipeline_mode = #tpu.pipeline_mode<synchronous>, transform_indices = @transform_2, window_bounds = array<i64: 1, 128>}, {pipeline_mode = #tpu.pipeline_mode<synchronous>, transform_indices = @transform_3, window_bounds = array<i64: 128, 128>}, {pipeline_mode = #tpu.pipeline_mode<synchronous>, transform_indices = @transform_4, window_bounds = array<i64: 1, 128>}, {pipeline_mode = #tpu.pipeline_mode<synchronous>, transform_indices = @transform_5, window_bounds = array<i64: 128, 16>}, {pipeline_mode = #tpu.pipeline_mode<synchronous>, transform_indices = @transform_6, window_bounds = array<i64: 1, 16>}, {transform_indices = @transform_7, window_bounds = array<i64: 8, 16>}]} {
    %c0 = arith.constant 0 : index
    %c0_0 = arith.constant 0 : index
    %0 = vector.load %arg1[%c0, %c0_0] : memref<8x32xf32, #tpu.memory_space<vmem>>, vector<8x32xf32>
    %c0_1 = arith.constant 0 : index
    %c0_2 = arith.constant 0 : index
    %1 = vector.load %arg2[%c0_1, %c0_2] : memref<32x128xf32, #tpu.memory_space<vmem>>, vector<32x128xf32>
    %c0_3 = arith.constant 0 : index
    %c0_4 = arith.constant 0 : index
    %2 = vector.load %arg3[%c0_3, %c0_4] : memref<1x128xf32, #tpu.memory_space<vmem>>, vector<1x128xf32>
    %cst = arith.constant dense<0.000000e+00> : vector<8x128xf32>
    %3 = tpu.matmul %0, %1, %cst {dimension_numbers = #tpu.dot_dimension_numbers<[1], [0], [0], [1], [0, 0, 1, 1], [], []>} : vector<8x32xf32>, vector<32x128xf32>, vector<8x128xf32> -> vector<8x128xf32>
    %4 = vector.broadcast %2 : vector<1x128xf32> to vector<8x128xf32>
    %5 = arith.addf %3, %4 : vector<8x128xf32>
    %cst_5 = arith.constant 0.000000e+00 : f32
    %6 = vector.broadcast %cst_5 : f32 to vector<8x128xf32>
    %7 = arith.maximumf %5, %6 : vector<8x128xf32>
    %c0_6 = arith.constant 0 : index
    %c0_7 = arith.constant 0 : index
    %8 = vector.load %arg4[%c0_6, %c0_7] : memref<128x128xf32, #tpu.memory_space<vmem>>, vector<128x128xf32>
    %c0_8 = arith.constant 0 : index
    %c0_9 = arith.constant 0 : index
    %9 = vector.load %arg5[%c0_8, %c0_9] : memref<1x128xf32, #tpu.memory_space<vmem>>, vector<1x128xf32>
    %cst_10 = arith.constant dense<0.000000e+00> : vector<8x128xf32>
    %10 = tpu.matmul %7, %8, %cst_10 {dimension_numbers = #tpu.dot_dimension_numbers<[1], [0], [0], [1], [0, 0, 1, 1], [], []>} : vector<8x128xf32>, vector<128x128xf32>, vector<8x128xf32> -> vector<8x128xf32>
    %11 = vector.broadcast %9 : vector<1x128xf32> to vector<8x128xf32>
    %12 = arith.addf %10, %11 : vector<8x128xf32>
    %cst_11 = arith.constant 0.000000e+00 : f32
    %13 = vector.broadcast %cst_11 : f32 to vector<8x128xf32>
    %14 = arith.maximumf %12, %13 : vector<8x128xf32>
    %c0_12 = arith.constant 0 : index
    %c0_13 = arith.constant 0 : index
    %15 = vector.load %arg6[%c0_12, %c0_13] : memref<128x16xf32, #tpu.memory_space<vmem>>, vector<128x16xf32>
    %c0_14 = arith.constant 0 : index
    %c0_15 = arith.constant 0 : index
    %16 = vector.load %arg7[%c0_14, %c0_15] : memref<1x16xf32, #tpu.memory_space<vmem>>, vector<1x16xf32>
    %cst_16 = arith.constant dense<0.000000e+00> : vector<8x16xf32>
    %17 = tpu.matmul %14, %15, %cst_16 {dimension_numbers = #tpu.dot_dimension_numbers<[1], [0], [0], [1], [0, 0, 1, 1], [], []>} : vector<8x128xf32>, vector<128x16xf32>, vector<8x16xf32> -> vector<8x16xf32>
    %18 = vector.broadcast %16 : vector<1x16xf32> to vector<8x16xf32>
    %19 = arith.addf %17, %18 : vector<8x16xf32>
    %c0_17 = arith.constant 0 : index
    %c0_18 = arith.constant 0 : index
    %20 = vector.load %arg8[%c0_17, %c0_18] : memref<8x16xf32, #tpu.memory_space<vmem>>, vector<8x16xf32>
    tpu.vector_store %arg8[%c0_17, %c0_18], %19 {strides = array<i32>} : memref<8x16xf32, #tpu.memory_space<vmem>>, vector<8x16xf32>,
    return
  }
  func.func @transform_0(%arg0: i32) -> (i32, i32) {
    %c0_i32 = arith.constant 0 : i32
    %c0_i32_0 = arith.constant 0 : i32
    return %arg0, %c0_i32 : i32, i32
  }
  func.func @transform_1(%arg0: i32) -> (i32, i32) {
    %c0_i32 = arith.constant 0 : i32
    %c0_i32_0 = arith.constant 0 : i32
    %c0_i32_1 = arith.constant 0 : i32
    return %c0_i32, %c0_i32_0 : i32, i32
  }
  func.func @transform_2(%arg0: i32) -> (i32, i32) {
    %c0_i32 = arith.constant 0 : i32
    %c0_i32_0 = arith.constant 0 : i32
    %c0_i32_1 = arith.constant 0 : i32
    return %c0_i32, %c0_i32_0 : i32, i32
  }
  func.func @transform_3(%arg0: i32) -> (i32, i32) {
    %c0_i32 = arith.constant 0 : i32
    %c0_i32_0 = arith.constant 0 : i32
    %c0_i32_1 = arith.constant 0 : i32
    return %c0_i32, %c0_i32_0 : i32, i32
  }
  func.func @transform_4(%arg0: i32) -> (i32, i32) {
    %c0_i32 = arith.constant 0 : i32
    %c0_i32_0 = arith.constant 0 : i32
    %c0_i32_1 = arith.constant 0 : i32
    return %c0_i32, %c0_i32_0 : i32, i32
  }
  func.func @transform_5(%arg0: i32) -> (i32, i32) {
    %c0_i32 = arith.constant 0 : i32
    %c0_i32_0 = arith.constant 0 : i32
    %c0_i32_1 = arith.constant 0 : i32
    return %c0_i32, %c0_i32_0 : i32, i32
  }
  func.func @transform_6(%arg0: i32) -> (i32, i32) {
    %c0_i32 = arith.constant 0 : i32
    %c0_i32_0 = arith.constant 0 : i32
    %c0_i32_1 = arith.constant 0 : i32
    return %c0_i32, %c0_i32_0 : i32, i32
  }
  func.func @transform_7(%arg0: i32) -> (i32, i32) {
    %c0_i32 = arith.constant 0 : i32
    %c0_i32_0 = arith.constant 0 : i32
    return %arg0, %c0_i32 : i32, i32
  }
}

</mosaic_0001>

<llo_original>
// kernel: tpu_custom_call.1
$region0: #{tpu_custom_call.1}
  #allocation0 [shape = 'u32[]', space=smem, size = 0x4, offset = 0x4, fixed_abs, tag = 'smem constant byte address 0x4 - core index']
  #allocation1 [shape = 'u32[72,128]{1,0:T(1,128)}', space=vmem, size = 0x9000, scoped, tag = 'internal scratch']
  %s0 = inlined_call_operand.vmem [shape: f32[8,32], index: 0, kind: input, shape index: {}]
  %s1 = inlined_call_operand.hbm [shape: f32[32,128], index: 1, kind: input, shape index: {}]
  %s2 = inlined_call_operand.vmem [shape: f32[1,128], index: 2, kind: input, shape index: {}]
  %s3 = inlined_call_operand.vmem [shape: f32[128,128], index: 3, kind: input, shape index: {}]
  %s4 = inlined_call_operand.vmem [shape: f32[1,128], index: 4, kind: input, shape index: {}]
  %s5 = inlined_call_operand.vmem [shape: f32[128,16], index: 5, kind: input, shape index: {}]
  %s6 = inlined_call_operand.vmem [shape: f32[1,16], index: 6, kind: input, shape index: {}]
  %s7 = inlined_call_operand.hbm [shape: f32[8,16], index: 7, kind: output, shape index: {}]
  %s8 = sld [smem:[#allocation0]]
  $region42: #{tpu_custom_call.1} parent=0
    _
  %s10 = ssub.s32 1, %s8
  %s11 = scalar_select 0, %s10, %s8
  $region1: #{tpu_custom_call.1} parent=0
    #allocation2 [shape = 'u8[16384]{0}', space=vmem, size = 0x4000, scoped, tag = 'input window, operand 1, single buffered']
    #allocation3 [shape = 's32[1]{0}', space=sflag, size = 0x4, scoped, tag = 'scoped memory for tpu_custom_call.1']
    #allocation4 [shape = 's32[1]{0}', space=sflag, size = 0x4, scoped, tag = 'scoped memory for tpu_custom_call.1']
    #allocation5 [shape = 'u8[4096]{0}', space=vmem, size = 0x1000, scoped, tag = 'output window, operand 0, single buffered']
    %12 = vsyncpa [#allocation3], 0
    %13 = vsyncpa [#allocation4], 0
    // Predicated region
    $region2: #{tpu_custom_call.1} parent=1 // pred_check
      _
    $region3: #{tpu_custom_call.1} parent=1 // pred_check_branch
      %15 = sbr.rel (0) target = $region5
    $region4: #{tpu_custom_call.1} parent=1 // pred_region
      _
    $region5: #{tpu_custom_call.1} parent=1 // pred_fallthru
      _
    // Predicated region
    $region6: #{tpu_custom_call.1} parent=1 // pred_check
      _
    $region7: #{tpu_custom_call.1} parent=1 // pred_check_branch
      %17 = sbr.rel (0) target = $region9
    $region8: #{tpu_custom_call.1} parent=1 // pred_region
      %19 = vsyncadd [#allocation3], 0
      %s20 = sshll.u32 %s1, 4
      %s21 = int_to_ptr.hbm [resolvable:$true] %s20
      %s22 = sshll.u32 [#allocation2], 4
      %s23 = int_to_ptr.vmem [resolvable:$true] %s22
      %28 = dma.hbm_to_vmem [thread:$0]  %s21, 512, %s23, [#allocation3], 128, 128, 8
    $region9: #{tpu_custom_call.1} parent=1 // pred_fallthru
      _
    // Predicated region
    $region10: #{tpu_custom_call.1} parent=1 // pred_check
      _
    $region11: #{tpu_custom_call.1} parent=1 // pred_check_branch
      %30 = sbr.rel (0) target = $region13
    $region12: #{tpu_custom_call.1} parent=1 // pred_region
      _
    $region13: #{tpu_custom_call.1} parent=1 // pred_fallthru
      _
    // Predicated region
    $region14: #{tpu_custom_call.1} parent=1 // pred_check
      _
    $region15: #{tpu_custom_call.1} parent=1 // pred_check_branch
      %32 = sbr.rel (0) target = $region17
    $region16: #{tpu_custom_call.1} parent=1 // pred_region
      _
    $region17: #{tpu_custom_call.1} parent=1 // pred_fallthru
      _
    // Predicated region
    $region18: #{tpu_custom_call.1} parent=1 // pred_check
      _
    $region19: #{tpu_custom_call.1} parent=1 // pred_check_branch
      %34 = sbr.rel (0) target = $region21
    $region20: #{tpu_custom_call.1} parent=1 // pred_region
      _
    $region21: #{tpu_custom_call.1} parent=1 // pred_fallthru
      _
    // Predicated region
    $region22: #{tpu_custom_call.1} parent=1 // pred_check
      _
    $region23: #{tpu_custom_call.1} parent=1 // pred_check_branch
      %36 = sbr.rel (0) target = $region25
    $region24: #{tpu_custom_call.1} parent=1 // pred_region
      _
    $region25: #{tpu_custom_call.1} parent=1 // pred_fallthru
      _
    // Predicated region
    $region26: #{tpu_custom_call.1} parent=1 // pred_check
      _
    $region27: #{tpu_custom_call.1} parent=1 // pred_check_branch
      %38 = sbr.rel (0) target = $region29
    $region28: #{tpu_custom_call.1} parent=1 // pred_region
      _
    $region29: #{tpu_custom_call.1} parent=1 // pred_fallthru
      _
    // Predicated region
    $region30: #{tpu_custom_call.1} parent=1 // pred_check
      _
    $region31: #{tpu_custom_call.1} parent=1 // pred_check_branch
      %40 = sbr.rel (0) target = $region33
    $region32: #{tpu_custom_call.1} parent=1 // pred_region
      %42 = dma.done [#allocation3], 512
    $region33: #{tpu_custom_call.1} parent=1 // pred_fallthru
      _
    %v43 = vld [vmem:[%s0] sm:$0xff]
    %v44 = vld [vmem:[#allocation2] sm:$0xff]
    %v45 = vld [vmem:[#allocation2 + $0x8] sm:$0xff]
    %v46 = vld [vmem:[#allocation2 + $0x10] sm:$0xff]
    %v47 = vld [vmem:[#allocation2 + $0x18] sm:$0xff]
    %v48 = vld [vmem:[%s2] sm:$0x1]
    %v50 = vperm.slane %v48, 0
    %vm52 = vcmask 261120
    %v54 = vsel %vm52, %v43, 0
    %56 = vmatpush.msra.mxu0 0.0
    %57 = vmatpush.msra.mxu0 0.0
    %58 = vmatpush.msra.mxu0 0.0
    %59 = vmatpush.msra.mxu0 0.0
    %60 = vmatpush.msra.mxu0 0.0
    %61 = vmatpush.msra.mxu0 0.0
    %62 = vmatpush.msra.mxu0 0.0
    %63 = vmatpush.msra.mxu0 0.0
    %64 = vmatpush.msra.mxu0 0.0
    %65 = vmatpush.msra.mxu0 0.0
    %66 = vmatpush.msra.mxu0 0.0
    %67 = vmatpush.msra.mxu0 0.0
    %68 = vmatpush.msra.mxu0 %v47
    %69 = vmatpush.msra.mxu0 %v46
    %70 = vmatpush.msra.mxu0 %v45
    %71 = vmatpush.msra.mxu0 %v44
    %72 = vmatmul.f32.gmra.mxu0 %v54
    %v73 = vpop.f32.mrf.mxu0
    %v74 = vadd.f32 %v50, %v73
    %75 = vdwg.mxu0
    %v76 = vmax.f32 %v74, 0.0
    %v77 = vld [vmem:[%s3] sm:$0xff]
    %v78 = vld [vmem:[%s3 + $0x8] sm:$0xff]
    %v79 = vld [vmem:[%s3 + $0x10] sm:$0xff]
    %v80 = vld [vmem:[%s3 + $0x18] sm:$0xff]
    %v81 = vld [vmem:[%s3 + $0x20] sm:$0xff]
    %v82 = vld [vmem:[%s3 + $0x28] sm:$0xff]
    %v83 = vld [vmem:[%s3 + $0x30] sm:$0xff]
    %v84 = vld [vmem:[%s3 + $0x38] sm:$0xff]
    %v85 = vld [vmem:[%s3 + $0x40] sm:$0xff]
    %v86 = vld [vmem:[%s3 + $0x48] sm:$0xff]
    %v87 = vld [vmem:[%s3 + $0x50] sm:$0xff]
    %v88 = vld [vmem:[%s3 + $0x58] sm:$0xff]
    %v89 = vld [vmem:[%s3 + $0x60] sm:$0xff]
    %v90 = vld [vmem:[%s3 + $0x68] sm:$0xff]
    %v91 = vld [vmem:[%s3 + $0x70] sm:$0xff]
    %v92 = vld [vmem:[%s3 + $0x78] sm:$0xff]
    %v93 = vld [vmem:[%s4] sm:$0x1]
    %v95 = vperm.slane %v93, 0
    %97 = vmatpush.msra.mxu0 %v92
    %98 = vmatpush.msra.mxu0 %v91
    %99 = vmatpush.msra.mxu0 %v90
    %100 = vmatpush.msra.mxu0 %v89
    %101 = vmatpush.msra.mxu0 %v88
    %102 = vmatpush.msra.mxu0 %v87
    %103 = vmatpush.msra.mxu0 %v86
    %104 = vmatpush.msra.mxu0 %v85
    %105 = vmatpush.msra.mxu0 %v84
    %106 = vmatpush.msra.mxu0 %v83
    %107 = vmatpush.msra.mxu0 %v82
    %108 = vmatpush.msra.mxu0 %v81
    %109 = vmatpush.msra.mxu0 %v80
    %110 = vmatpush.msra.mxu0 %v79
    %111 = vmatpush.msra.mxu0 %v78
    %112 = vmatpush.msra.mxu0 %v77
    %113 = vmatmul.f32.gmra.mxu0 %v76
    %v114 = vpop.f32.mrf.mxu0
    %v115 = vadd.f32 %v95, %v114
    %116 = vdwg.mxu0
    %v117 = vmax.f32 %v115, 0.0
    %v118 = vld [vmem:[%s5] sm:$0xff]
    %v119 = vld [vmem:[%s5 + $0x8] sm:$0xff]
    %v120 = vld [vmem:[%s5 + $0x10] sm:$0xff]
    %v121 = vld [vmem:[%s5 + $0x18] sm:$0xff]
    %v122 = vld [vmem:[%s5 + $0x20] sm:$0xff]
    %v123 = vld [vmem:[%s5 + $0x28] sm:$0xff]
    %v124 = vld [vmem:[%s5 + $0x30] sm:$0xff]
    %v125 = vld [vmem:[%s5 + $0x38] sm:$0xff]
    %v126 = vld [vmem:[%s5 + $0x40] sm:$0xff]
    %v127 = vld [vmem:[%s5 + $0x48] sm:$0xff]
    %v128 = vld [vmem:[%s5 + $0x50] sm:$0xff]
    %v129 = vld [vmem:[%s5 + $0x58] sm:$0xff]
    %v130 = vld [vmem:[%s5 + $0x60] sm:$0xff]
    %v131 = vld [vmem:[%s5 + $0x68] sm:$0xff]
    %v132 = vld [vmem:[%s5 + $0x70] sm:$0xff]
    %v133 = vld [vmem:[%s5 + $0x78] sm:$0xff]
    %v134 = vld [vmem:[%s6] sm:$0x1]
    %v136 = vperm.slane %v134, 0
    %138 = vmatpush.msra.mxu0 %v133
    %139 = vmatpush.msra.mxu0 %v132
    %140 = vmatpush.msra.mxu0 %v131
    %141 = vmatpush.msra.mxu0 %v130
    %142 = vmatpush.msra.mxu0 %v129
    %143 = vmatpush.msra.mxu0 %v128
    %144 = vmatpush.msra.mxu0 %v127
    %145 = vmatpush.msra.mxu0 %v126
    %146 = vmatpush.msra.mxu0 %v125
    %147 = vmatpush.msra.mxu0 %v124
    %148 = vmatpush.msra.mxu0 %v123
    %149 = vmatpush.msra.mxu0 %v122
    %150 = vmatpush.msra.mxu0 %v121
    %151 = vmatpush.msra.mxu0 %v120
    %152 = vmatpush.msra.mxu0 %v119
    %153 = vmatpush.msra.mxu0 %v118
    %154 = vmatmul.f32.gmra.mxu0 %v117
    %v155 = vpop.f32.mrf.mxu0
    %v156 = vadd.f32 %v136, %v155
    %157 = vdwg.mxu0
    %vm158 = vcmask 130048
    %159 = vst.msk [vmem:[#allocation5] sm:$0xff] %vm158, %v156
    // Predicated region
    $region34: #{tpu_custom_call.1} parent=1 // pred_check
      _
    $region35: #{tpu_custom_call.1} parent=1 // pred_check_branch
      %161 = sbr.rel (0) target = $region37
    $region36: #{tpu_custom_call.1} parent=1 // pred_region
      %163 = vsyncadd [#allocation4], 0
      %s165 = sshll.u32 [#allocation5], 4
      %s166 = int_to_ptr.vmem [resolvable:$true] %s165
      %s167 = sshll.u32 %s7, 4
      %s168 = int_to_ptr.hbm [resolvable:$true] %s167
      %170 = dma.vmem_to_hbm [thread:$0]  %s166, 128, %s168, [#allocation4]
    $region37: #{tpu_custom_call.1} parent=1 // pred_fallthru
      _
    // Predicated region
    $region38: #{tpu_custom_call.1} parent=1 // pred_check
      _
    $region39: #{tpu_custom_call.1} parent=1 // pred_check_branch
      %172 = sbr.rel (0) target = $region41
    $region40: #{tpu_custom_call.1} parent=1 // pred_region
      %174 = dma.done [#allocation4], 128
    $region41: #{tpu_custom_call.1} parent=1 // pred_fallthru
      _
    %175 = vsyncpa [#allocation3], 1
    %176 = vsyncpa [#allocation4], 1

// kernel: tpu_custom_call.1
$region0: #{tpu_custom_call.1}
  #allocation0 [shape = 'u32[]', space=smem, size = 0x4, offset = 0x4, fixed_abs, tag = 'smem constant byte address 0x4 - core index']
  #allocation1 [shape = 'u32[72,128]{1,0:T(1,128)}', space=vmem, size = 0x9000, scoped, tag = 'internal scratch']
  %s0 = inlined_call_operand.vmem [shape: f32[8,32], index: 0, kind: input, shape index: {}]
  %s1 = inlined_call_operand.hbm [shape: f32[32,128], index: 1, kind: input, shape index: {}]
  %s2 = inlined_call_operand.vmem [shape: f32[1,128], index: 2, kind: input, shape index: {}]
  %s3 = inlined_call_operand.vmem [shape: f32[128,128], index: 3, kind: input, shape index: {}]
  %s4 = inlined_call_operand.vmem [shape: f32[1,128], index: 4, kind: input, shape index: {}]
  %s5 = inlined_call_operand.vmem [shape: f32[128,16], index: 5, kind: input, shape index: {}]
  %s6 = inlined_call_operand.vmem [shape: f32[1,16], index: 6, kind: input, shape index: {}]
  %s7 = inlined_call_operand.hbm [shape: f32[8,16], index: 7, kind: output, shape index: {}]
  %s8 = sld [smem:[#allocation0]]
  $region42: #{tpu_custom_call.1} parent=0
    _
  %s10 = ssub.s32 1, %s8
  %s11 = scalar_select 0, %s10, %s8
  $region1: #{tpu_custom_call.1} parent=0
    #allocation2 [shape = 'u8[16384]{0}', space=vmem, size = 0x4000, scoped, tag = 'input window, operand 1, single buffered']
    #allocation3 [shape = 's32[1]{0}', space=sflag, size = 0x4, scoped, tag = 'scoped memory for tpu_custom_call.1']
    #allocation4 [shape = 's32[1]{0}', space=sflag, size = 0x4, scoped, tag = 'scoped memory for tpu_custom_call.1']
    #allocation5 [shape = 'u8[4096]{0}', space=vmem, size = 0x1000, scoped, tag = 'output window, operand 0, single buffered']
    %12 = vsyncpa [#allocation3], 0
    %13 = vsyncpa [#allocation4], 0
    // Predicated region
    $region2: #{tpu_custom_call.1} parent=1 // pred_check
      _
    $region3: #{tpu_custom_call.1} parent=1 // pred_check_branch
      %15 = sbr.rel (0) target = $region5
    $region4: #{tpu_custom_call.1} parent=1 // pred_region
      _
    $region5: #{tpu_custom_call.1} parent=1 // pred_fallthru
      _
    // Predicated region
    $region6: #{tpu_custom_call.1} parent=1 // pred_check
      _
    $region7: #{tpu_custom_call.1} parent=1 // pred_check_branch
      %17 = sbr.rel (0) target = $region9
    $region8: #{tpu_custom_call.1} parent=1 // pred_region
      %19 = vsyncadd [#allocation3], 0
      %s20 = sshll.u32 %s1, 4
      %s21 = int_to_ptr.hbm [resolvable:$true] %s20
      %s22 = sshll.u32 [#allocation2], 4
      %s23 = int_to_ptr.vmem [resolvable:$true] %s22
      %28 = dma.hbm_to_vmem [thread:$0]  %s21, 512, %s23, [#allocation3], 128, 128, 8
    $region9: #{tpu_custom_call.1} parent=1 // pred_fallthru
      _
    // Predicated region
    $region10: #{tpu_custom_call.1} parent=1 // pred_check
      _
    $region11: #{tpu_custom_call.1} parent=1 // pred_check_branch
      %30 = sbr.rel (0) target = $region13
    $region12: #{tpu_custom_call.1} parent=1 // pred_region
      _
    $region13: #{tpu_custom_call.1} parent=1 // pred_fallthru
      _
    // Predicated region
    $region14: #{tpu_custom_call.1} parent=1 // pred_check
      _
    $region15: #{tpu_custom_call.1} parent=1 // pred_check_branch
      %32 = sbr.rel (0) target = $region17
    $region16: #{tpu_custom_call.1} parent=1 // pred_region
      _
    $region17: #{tpu_custom_call.1} parent=1 // pred_fallthru
      _
    // Predicated region
    $region18: #{tpu_custom_call.1} parent=1 // pred_check
      _
    $region19: #{tpu_custom_call.1} parent=1 // pred_check_branch
      %34 = sbr.rel (0) target = $region21
    $region20: #{tpu_custom_call.1} parent=1 // pred_region
      _
    $region21: #{tpu_custom_call.1} parent=1 // pred_fallthru
      _
    // Predicated region
    $region22: #{tpu_custom_call.1} parent=1 // pred_check
      _
    $region23: #{tpu_custom_call.1} parent=1 // pred_check_branch
      %36 = sbr.rel (0) target = $region25
    $region24: #{tpu_custom_call.1} parent=1 // pred_region
      _
    $region25: #{tpu_custom_call.1} parent=1 // pred_fallthru
      _
    // Predicated region
    $region26: #{tpu_custom_call.1} parent=1 // pred_check
      _
    $region27: #{tpu_custom_call.1} parent=1 // pred_check_branch
      %38 = sbr.rel (0) target = $region29
    $region28: #{tpu_custom_call.1} parent=1 // pred_region
      _
    $region29: #{tpu_custom_call.1} parent=1 // pred_fallthru
      _
    // Predicated region
    $region30: #{tpu_custom_call.1} parent=1 // pred_check
      _
    $region31: #{tpu_custom_call.1} parent=1 // pred_check_branch
      %40 = sbr.rel (0) target = $region33
    $region32: #{tpu_custom_call.1} parent=1 // pred_region
      %42 = dma.done [#allocation3], 512
    $region33: #{tpu_custom_call.1} parent=1 // pred_fallthru
      _
    %v43 = vld [vmem:[%s0] sm:$0xff]
    %v44 = vld [vmem:[#allocation2] sm:$0xff]
    %v45 = vld [vmem:[#allocation2 + $0x8] sm:$0xff]
    %v46 = vld [vmem:[#allocation2 + $0x10] sm:$0xff]
    %v47 = vld [vmem:[#allocation2 + $0x18] sm:$0xff]
    %v48 = vld [vmem:[%s2] sm:$0x1]
    %v50 = vperm.slane %v48, 0
    %vm52 = vcmask 261120
    %v54 = vsel %vm52, %v43, 0
    %56 = vmatpush.msra.mxu0 0.0
    %57 = vmatpush.msra.mxu0 0.0
    %58 = vmatpush.msra.mxu0 0.0
    %59 = vmatpush.msra.mxu0 0.0
    %60 = vmatpush.msra.mxu0 0.0
    %61 = vmatpush.msra.mxu0 0.0
    %62 = vmatpush.msra.mxu0 0.0
    %63 = vmatpush.msra.mxu0 0.0
    %64 = vmatpush.msra.mxu0 0.0
    %65 = vmatpush.msra.mxu0 0.0
    %66 = vmatpush.msra.mxu0 0.0
    %67 = vmatpush.msra.mxu0 0.0
    %68 = vmatpush.msra.mxu0 %v47
    %69 = vmatpush.msra.mxu0 %v46
    %70 = vmatpush.msra.mxu0 %v45
    %71 = vmatpush.msra.mxu0 %v44
    %72 = vmatmul.f32.gmra.mxu0 %v54
    %v73 = vpop.f32.mrf.mxu0
    %v74 = vadd.f32 %v50, %v73
    %75 = vdwg.mxu0
    %v76 = vmax.f32 %v74, 0.0
    %v77 = vld [vmem:[%s3] sm:$0xff]
    %v78 = vld [vmem:[%s3 + $0x8] sm:$0xff]
    %v79 = vld [vmem:[%s3 + $0x10] sm:$0xff]
    %v80 = vld [vmem:[%s3 + $0x18] sm:$0xff]
    %v81 = vld [vmem:[%s3 + $0x20] sm:$0xff]
    %v82 = vld [vmem:[%s3 + $0x28] sm:$0xff]
    %v83 = vld [vmem:[%s3 + $0x30] sm:$0xff]
    %v84 = vld [vmem:[%s3 + $0x38] sm:$0xff]
    %v85 = vld [vmem:[%s3 + $0x40] sm:$0xff]
    %v86 = vld [vmem:[%s3 + $0x48] sm:$0xff]
    %v87 = vld [vmem:[%s3 + $0x50] sm:$0xff]
    %v88 = vld [vmem:[%s3 + $0x58] sm:$0xff]
    %v89 = vld [vmem:[%s3 + $0x60] sm:$0xff]
    %v90 = vld [vmem:[%s3 + $0x68] sm:$0xff]
    %v91 = vld [vmem:[%s3 + $0x70] sm:$0xff]
    %v92 = vld [vmem:[%s3 + $0x78] sm:$0xff]
    %v93 = vld [vmem:[%s4] sm:$0x1]
    %v95 = vperm.slane %v93, 0
    %97 = vmatpush.msra.mxu0 %v92
    %98 = vmatpush.msra.mxu0 %v91
    %99 = vmatpush.msra.mxu0 %v90
    %100 = vmatpush.msra.mxu0 %v89
    %101 = vmatpush.msra.mxu0 %v88
    %102 = vmatpush.msra.mxu0 %v87
    %103 = vmatpush.msra.mxu0 %v86
    %104 = vmatpush.msra.mxu0 %v85
    %105 = vmatpush.msra.mxu0 %v84
    %106 = vmatpush.msra.mxu0 %v83
    %107 = vmatpush.msra.mxu0 %v82
    %108 = vmatpush.msra.mxu0 %v81
    %109 = vmatpush.msra.mxu0 %v80
    %110 = vmatpush.msra.mxu0 %v79
    %111 = vmatpush.msra.mxu0 %v78
    %112 = vmatpush.msra.mxu0 %v77
    %113 = vmatmul.f32.gmra.mxu0 %v76
    %v114 = vpop.f32.mrf.mxu0
    %v115 = vadd.f32 %v95, %v114
    %116 = vdwg.mxu0
    %v117 = vmax.f32 %v115, 0.0
    %v118 = vld [vmem:[%s5] sm:$0xff]
    %v119 = vld [vmem:[%s5 + $0x8] sm:$0xff]
    %v120 = vld [vmem:[%s5 + $0x10] sm:$0xff]
    %v121 = vld [vmem:[%s5 + $0x18] sm:$0xff]
    %v122 = vld [vmem:[%s5 + $0x20] sm:$0xff]
    %v123 = vld [vmem:[%s5 + $0x28] sm:$0xff]
    %v124 = vld [vmem:[%s5 + $0x30] sm:$0xff]
    %v125 = vld [vmem:[%s5 + $0x38] sm:$0xff]
    %v126 = vld [vmem:[%s5 + $0x40] sm:$0xff]
    %v127 = vld [vmem:[%s5 + $0x48] sm:$0xff]
    %v128 = vld [vmem:[%s5 + $0x50] sm:$0xff]
    %v129 = vld [vmem:[%s5 + $0x58] sm:$0xff]
    %v130 = vld [vmem:[%s5 + $0x60] sm:$0xff]
    %v131 = vld [vmem:[%s5 + $0x68] sm:$0xff]
    %v132 = vld [vmem:[%s5 + $0x70] sm:$0xff]
    %v133 = vld [vmem:[%s5 + $0x78] sm:$0xff]
    %v134 = vld [vmem:[%s6] sm:$0x1]
    %v136 = vperm.slane %v134, 0
    %138 = vmatpush.msra.mxu0 %v133
    %139 = vmatpush.msra.mxu0 %v132
    %140 = vmatpush.msra.mxu0 %v131
    %141 = vmatpush.msra.mxu0 %v130
    %142 = vmatpush.msra.mxu0 %v129
    %143 = vmatpush.msra.mxu0 %v128
    %144 = vmatpush.msra.mxu0 %v127
    %145 = vmatpush.msra.mxu0 %v126
    %146 = vmatpush.msra.mxu0 %v125
    %147 = vmatpush.msra.mxu0 %v124
    %148 = vmatpush.msra.mxu0 %v123
    %149 = vmatpush.msra.mxu0 %v122
    %150 = vmatpush.msra.mxu0 %v121
    %151 = vmatpush.msra.mxu0 %v120
    %152 = vmatpush.msra.mxu0 %v119
    %153 = vmatpush.msra.mxu0 %v118
    %154 = vmatmul.f32.gmra.mxu0 %v117
    %v155 = vpop.f32.mrf.mxu0
    %v156 = vadd.f32 %v136, %v155
    %157 = vdwg.mxu0
    %vm158 = vcmask 130048
    %159 = vst.msk [vmem:[#allocation5] sm:$0xff] %vm158, %v156
    // Predicated region
    $region34: #{tpu_custom_call.1} parent=1 // pred_check
      _
    $region35: #{tpu_custom_call.1} parent=1 // pred_check_branch
      %161 = sbr.rel (0) target = $region37
    $region36: #{tpu_custom_call.1} parent=1 // pred_region
      %163 = vsyncadd [#allocation4], 0
      %s165 = sshll.u32 [#allocation5], 4
      %s166 = int_to_ptr.vmem [resolvable:$true] %s165
      %s167 = sshll.u32 %s7, 4
      %s168 = int_to_ptr.hbm [resolvable:$true] %s167
      %170 = dma.vmem_to_hbm [thread:$0]  %s166, 128, %s168, [#allocation4]
    $region37: #{tpu_custom_call.1} parent=1 // pred_fallthru
      _
    // Predicated region
    $region38: #{tpu_custom_call.1} parent=1 // pred_check
      _
    $region39: #{tpu_custom_call.1} parent=1 // pred_check_branch
      %172 = sbr.rel (0) target = $region41
    $region40: #{tpu_custom_call.1} parent=1 // pred_region
      %174 = dma.done [#allocation4], 128
    $region41: #{tpu_custom_call.1} parent=1 // pred_fallthru
      _
    %175 = vsyncpa [#allocation3], 1
    %176 = vsyncpa [#allocation4], 1

</llo_original>
